<compile_context>
chip_gen: v6e
topology: v6e:2x2x1
jax: 0.10.0
libtpu: 0.0.40
codegen_flags: <defaults>
</compile_context>

<pallas_src>
import numpy as np
import jax
import jax.numpy as jnp
from jax import lax
from jax.experimental import pallas as pl
from jax.experimental.pallas import tpu as pltpu

# Above the 16/32 MiB scoped-VMEM defaults, safely below v7x's 64 MiB physical.
_VMEM_LIMIT_BYTES = 48 * 1024 * 1024


def _round_up(x, m):
    return ((x + m - 1) // m) * m


def _pick_tile(total, candidates):
    for c in candidates:
        if total % c == 0:
            return c
    return total


# --------------------- kernel 1: per-edge similarity + source histogram ------

def _edge_sim_hist_kernel(logits_ref, row_ref, col_ref, sim_ref, hist_ref):
    t = pl.program_id(0)
    n_pad = logits_ref.shape[0]
    te = row_ref.shape[1]

    # Sigmoid nonlinearity (naive form to match the numpy reference path).
    sig = 1.0 / (1.0 + jnp.exp(-logits_ref[...]))              # [N, 1]

    node = lax.broadcasted_iota(jnp.int32, (n_pad, te), 0)     # [N, TE]
    row_oh = node == row_ref[...]                              # [N, TE]
    col_oh = node == col_ref[...]                              # [N, TE]

    # One-hot endpoint gather, computed once (sublane reduce -> lane-dense rows).
    row_val = jnp.sum(jnp.where(row_oh, sig, 0.0), axis=0, keepdims=True)  # [1, TE]
    col_val = jnp.sum(jnp.where(col_oh, sig, 0.0), axis=0, keepdims=True)  # [1, TE]

    # L1 distance -> similarity, lane-dense store.
    sim_ref[...] = 1.0 - jnp.abs(row_val - col_val)

    # Per-node histogram of source endpoints (O(N*E) instead of O(E^2) counts).
    part = jnp.sum(col_oh, axis=1, keepdims=True, dtype=jnp.int32)         # [N, 1]

    @pl.when(t == 0)
    def _():
        hist_ref[...] = jnp.zeros_like(hist_ref)

    hist_ref[...] += part


# --------------------- kernel 2: pairwise within-source-group rank -----------

def _pairwise_rank_kernel(ratio_ref, sim_i_ref, col_i_ref, sim_j_ref, col_j_ref,
                          hist_ref, rank_ref, count_ref, sel_ref):
    i = pl.program_id(0)
    j = pl.program_id(1)
    nj = pl.num_programs(1)
    ti = sim_i_ref.shape[1]            # query edges on lanes
    tj = sim_j_ref.shape[0]            # competitor edges on sublanes

    @pl.when(j == 0)
    def _():
        rank_ref[...] = jnp.zeros_like(rank_ref)

    sim_i = sim_i_ref[...]             # [1, TI]
    col_i = col_i_ref[...]             # [1, TI]
    sim_j = sim_j_ref[...]             # [TJ, 1]
    col_j = col_j_ref[...]             # [TJ, 1]

    # Global edge ids for the stable tie-break (1-D iotas, broadcast in compare).
    idx_i = i * ti + lax.broadcasted_iota(jnp.int32, (1, ti), 1)   # [1, TI]
    idx_j = j * tj + lax.broadcasted_iota(jnp.int32, (tj, 1), 0)   # [TJ, 1]

    # "competitor edge j beats query edge i" within the same source group.
    same = col_j == col_i                                            # [TJ, TI]
    beats = jnp.where(sim_j == sim_i, idx_j < idx_i, sim_j > sim_i)  # [TJ, TI]
    contrib = jnp.logical_and(same, beats)

    # Sublane (VPU) reduce -> lane-dense [1, TI]; accumulate into resident output.
    rank_ref[...] += jnp.sum(contrib, axis=0, keepdims=True, dtype=jnp.int32)

    @pl.when(j == nj - 1)
    def _():
        # Group size via per-node histogram gather (O(N*TI), once per i tile).
        n_pad = hist_ref.shape[0]
        node = lax.broadcasted_iota(jnp.int32, (n_pad, ti), 0)       # [N, TI]
        col_oh = node == col_i                                       # [N, TI]
        count = jnp.sum(jnp.where(col_oh, hist_ref[...], 0),
                        axis=0, keepdims=True, dtype=jnp.int32)      # [1, TI]
        # floor(count * ratio) in f32 matches Python int(size * ratio) exactly
        # for the ratios GNNSelector uses (0.5 and 1.0).
        k = jnp.floor(count.astype(jnp.float32) * ratio_ref[0, 0]).astype(jnp.int32)
        count_ref[...] = count
        sel_ref[...] = (rank_ref[...] < k).astype(jnp.int32)


# --------------------------------- wrapper ------------------------------------

def label_aware_pool_pallas(logits, edge_index, ratio=0.5):
    """Per-edge (similarity, within-source rank, source group size, selected flag)."""
    logits = jnp.asarray(logits, jnp.float32).reshape(-1)
    edge_index = jnp.asarray(edge_index, jnp.int32)
    n = logits.shape[0]
    e = edge_index.shape[1]
    n_pad = _round_up(max(n, 8), 8)
    e_pad = _round_up(max(e, 128), 128)
    te = _pick_tile(e_pad, (512, 256, 128))         # edge tile (lanes), kernel 1
    ti = _pick_tile(e_pad, (512, 256, 128))         # query tile (lanes), kernel 2
    tj = _pick_tile(e_pad, (1024, 512, 256, 128))   # competitor tile (sublanes)

    logits_col = jnp.pad(logits, (0, n_pad - n)).reshape(n_pad, 1)
    row = edge_index[0]
    col = edge_index[1]
    # Padded edges: row -1 never matches a node; each padded edge's col gets a
    # unique negative sentinel so it never joins (or pollutes) a real source group.
    row_r = jnp.pad(row, (0, e_pad - e), constant_values=-1).reshape(1, e_pad)
    col_p = jnp.concatenate([col, -1 - jnp.arange(e_pad - e, dtype=jnp.int32)])
    col_r = col_p.reshape(1, e_pad)

    # ---- kernel 1: lane-dense per-edge sim [1,E] + per-node source histogram [N,1]
    sim_r, hist = pl.pallas_call(
        _edge_sim_hist_kernel,
        out_shape=(jax.ShapeDtypeStruct((1, e_pad), jnp.float32),
                   jax.ShapeDtypeStruct((n_pad, 1), jnp.int32)),
        grid=(e_pad // te,),
        in_specs=[
            pl.BlockSpec((n_pad, 1), lambda t: (0, 0)),
            pl.BlockSpec((1, te), lambda t: (0, t)),
            pl.BlockSpec((1, te), lambda t: (0, t)),
        ],
        out_specs=(
            pl.BlockSpec((1, te), lambda t: (0, t)),
            pl.BlockSpec((n_pad, 1), lambda t: (0, 0)),
        ),
        compiler_params=pltpu.CompilerParams(
            dimension_semantics=("arbitrary",),
            vmem_limit_bytes=_VMEM_LIMIT_BYTES),
    )(logits_col, row_r, col_r)

    # Competitor (sublane) orientation is a cheap relayout of the SAME values,
    # so the equality tie-break in kernel 2 is bit-exact by construction.
    sim_c = sim_r.reshape(e_pad, 1)
    col_c = col_r.reshape(e_pad, 1)
    ratio_arr = jnp.full((1, 1), float(ratio), dtype=jnp.float32)

    # ---- kernel 2: tiled O(E^2) pairwise rank + selection (lane-dense outputs)
    rank, count, sel = pl.pallas_call(
        _pairwise_rank_kernel,
        out_shape=(jax.ShapeDtypeStruct((1, e_pad), jnp.int32),
                   jax.ShapeDtypeStruct((1, e_pad), jnp.int32),
                   jax.ShapeDtypeStruct((1, e_pad), jnp.int32)),
        grid=(e_pad // ti, e_pad // tj),
        in_specs=[
            pl.BlockSpec(memory_space=pltpu.MemorySpace.SMEM),   # ratio scalar
            pl.BlockSpec((1, ti), lambda i, j: (0, i)),          # sim, query (lanes)
            pl.BlockSpec((1, ti), lambda i, j: (0, i)),          # col, query (lanes)
            pl.BlockSpec((tj, 1), lambda i, j: (j, 0)),          # sim, competitor (sublanes)
            pl.BlockSpec((tj, 1), lambda i, j: (j, 0)),          # col, competitor (sublanes)
            pl.BlockSpec((n_pad, 1), lambda i, j: (0, 0)),       # per-node histogram
        ],
        out_specs=(
            pl.BlockSpec((1, ti), lambda i, j: (0, i)),
            pl.BlockSpec((1, ti), lambda i, j: (0, i)),
            pl.BlockSpec((1, ti), lambda i, j: (0, i)),
        ),
        compiler_params=pltpu.CompilerParams(
            dimension_semantics=("parallel", "arbitrary"),
            vmem_limit_bytes=_VMEM_LIMIT_BYTES),
    )(ratio_arr, sim_r, col_r, sim_c, col_c, hist)

    return sim_r[0, :e], rank[0, :e], count[0, :e], sel[0, :e]


def label_aware_pool(logits, edge_index, ratio=0.5):
    sim, rank, count, sel = label_aware_pool_pallas(logits, edge_index, ratio)
    jax.block_until_ready((sim, rank, count, sel))
    ei = np.asarray(edge_index)
    sel_np = np.asarray(sel).astype(bool)
    rank_np = np.asarray(rank)
    src = ei[1]
    pos = np.nonzero(sel_np)[0]
    # Same ordering as the torch reference: sources in increasing order; within a
    # source, edges in descending-similarity (topk) order via the in-kernel rank.
    order = np.lexsort((rank_np[pos], src[pos]))
    # TODO(synk): the output edge count is data dependent, so the final
    # compaction/concat happens on host (dynamic shapes are not expressible in a
    # Pallas/JAX kernel).
    return ei[:, pos[order]]


def _reference_numpy(logits, edge_index, ratio=0.5):
    """Pure-numpy emulation of the PyTorch LabelAwarePool forward (L1, sigmoid)."""
    lg = (1.0 / (1.0 + np.exp(-logits.astype(np.float32)))).flatten()
    ei = np.asarray(edge_index)
    row_v = lg[ei[0]]
    col_v = lg[ei[1]]
    sim = 1.0 - np.abs(row_v - col_v)
    src = ei[1]
    chunks = []
    for s in range(int(src.max()) + 1):
        m = src == s
        if not m.any():
            continue
        simi = sim[m]
        edges_s = ei[:, m]
        k = int(simi.shape[0] * ratio)
        idx = np.argsort(-simi, kind="stable")[:k]
        chunks.append(edges_s[:, idx])
    if chunks:
        return np.concatenate(chunks, axis=-1)
    return np.zeros((2, 0), dtype=ei.dtype)


if __name__ == "__main__":
    num_nodes, num_edges = 16, 48
    key = jax.random.PRNGKey(0)
    k_l, k_r, k_c = jax.random.split(key, 3)
    logits = jax.random.normal(k_l, (num_nodes,), dtype=jnp.float32)   # node logits
    row = jax.random.randint(k_r, (num_edges,), 0, num_nodes, dtype=jnp.int32)
    col = jax.random.randint(k_c, (num_edges,), 0, num_nodes, dtype=jnp.int32)
    edge_index = jnp.stack([row, col], axis=0)

    # GNNSelector uses LabelAwarePool(ratio=0.5) and LabelAwarePool(ratio=1);
    # ratio is a runtime SMEM scalar so both reuse the same compiled kernels.
    for r in (0.5, 1.0):
        new_edges = label_aware_pool(logits, edge_index, ratio=r)
        ref = _reference_numpy(np.asarray(logits), np.asarray(edge_index), ratio=r)
        assert new_edges.shape == ref.shape, (r, new_edges.shape, ref.shape)
        assert np.array_equal(new_edges, ref), f"kernel mismatch vs reference (ratio={r})"
    print("KERNEL_OK")
</pallas_src>

<mosaic_0001>
module attributes {stable_mosaic.version = 11 : i64} {
  func.func @_edge_sim_hist_kernel(%arg0: i32, %arg1: memref<16x1xf32, #tpu.memory_space<vmem>>, %arg2: memref<1x128xi32, #tpu.memory_space<vmem>>, %arg3: memref<1x128xi32, #tpu.memory_space<vmem>>, %arg4: memref<1x128xf32, #tpu.memory_space<vmem>>, %arg5: memref<16x1xi32, #tpu.memory_space<vmem>>) attributes {dimension_semantics = [#tpu.dimension_semantics<arbitrary>], iteration_bounds = array<i64: 1>, scalar_prefetch = 0 : i64, scratch_operands = 0 : i64, tpu.core_type = #tpu.core_type<tc>, window_params = [{pipeline_mode = #tpu.pipeline_mode<synchronous>, transform_indices = @transform_0, window_bounds = array<i64: 16, 1>}, {transform_indices = @transform_1, window_bounds = array<i64: 1, 128>}, {transform_indices = @transform_2, window_bounds = array<i64: 1, 128>}, {transform_indices = @transform_3, window_bounds = array<i64: 1, 128>}, {pipeline_mode = #tpu.pipeline_mode<synchronous>, transform_indices = @transform_4, window_bounds = array<i64: 16, 1>}]} {
    %c0 = arith.constant 0 : index
    %c0_0 = arith.constant 0 : index
    %0 = vector.load %arg1[%c0, %c0_0] : memref<16x1xf32, #tpu.memory_space<vmem>>, vector<16x1xf32>
    %cst = arith.constant 0.000000e+00 : f32
    %1 = vector.broadcast %cst : f32 to vector<16x1xf32>
    %2 = arith.subf %1, %0 : vector<16x1xf32>
    %3 = math.exp %2 : vector<16x1xf32>
    %cst_1 = arith.constant 1.000000e+00 : f32
    %4 = vector.broadcast %cst_1 : f32 to vector<16x1xf32>
    %5 = arith.addf %4, %3 : vector<16x1xf32>
    %cst_2 = arith.constant 1.000000e+00 : f32
    %6 = vector.broadcast %cst_2 : f32 to vector<16x1xf32>
    %7 = arith.divf %6, %5 : vector<16x1xf32>
    %8 = tpu.iota {dimensions = array<i32: 0>} : vector<16x128xi32>
    %c0_3 = arith.constant 0 : index
    %c0_4 = arith.constant 0 : index
    %9 = vector.load %arg2[%c0_3, %c0_4] : memref<1x128xi32, #tpu.memory_space<vmem>>, vector<1x128xi32>
    %10 = vector.broadcast %9 : vector<1x128xi32> to vector<16x128xi32>
    %11 = arith.cmpi eq, %8, %10 : vector<16x128xi32>
    %c0_5 = arith.constant 0 : index
    %c0_6 = arith.constant 0 : index
    %12 = vector.load %arg3[%c0_5, %c0_6] : memref<1x128xi32, #tpu.memory_space<vmem>>, vector<1x128xi32>
    %13 = vector.broadcast %12 : vector<1x128xi32> to vector<16x128xi32>
    %14 = arith.cmpi eq, %8, %13 : vector<16x128xi32>
    %cst_7 = arith.constant 0.000000e+00 : f32
    %15 = vector.shape_cast %7 : vector<16x1xf32> to vector<16x1xf32>
    %16 = vector.broadcast %15 : vector<16x1xf32> to vector<16x128xf32>
    %17 = vector.broadcast %cst_7 : f32 to vector<16x128xf32>
    %18 = arith.select %11, %16, %17 : vector<16x128xi1>, vector<16x128xf32>
    %cst_8 = arith.constant dense<0.000000e+00> : vector<128xf32>
    %19 = vector.multi_reduction <add>, %18, %cst_8 [0] : vector<16x128xf32> to vector<128xf32>
    %20 = vector.shape_cast %19 : vector<128xf32> to vector<1x128xf32>
    %cst_9 = arith.constant 0.000000e+00 : f32
    %21 = vector.shape_cast %7 : vector<16x1xf32> to vector<16x1xf32>
    %22 = vector.broadcast %21 : vector<16x1xf32> to vector<16x128xf32>
    %23 = vector.broadcast %cst_9 : f32 to vector<16x128xf32>
    %24 = arith.select %14, %22, %23 : vector<16x128xi1>, vector<16x128xf32>
    %cst_10 = arith.constant dense<0.000000e+00> : vector<128xf32>
    %25 = vector.multi_reduction <add>, %24, %cst_10 [0] : vector<16x128xf32> to vector<128xf32>
    %26 = vector.shape_cast %25 : vector<128xf32> to vector<1x128xf32>
    %27 = arith.subf %20, %26 : vector<1x128xf32>
    %28 = math.absf %27 : vector<1x128xf32>
    %cst_11 = arith.constant 1.000000e+00 : f32
    %29 = vector.broadcast %cst_11 : f32 to vector<1x128xf32>
    %30 = arith.subf %29, %28 : vector<1x128xf32>
    %c0_12 = arith.constant 0 : index
    %c0_13 = arith.constant 0 : index
    %31 = vector.load %arg4[%c0_12, %c0_13] : memref<1x128xf32, #tpu.memory_space<vmem>>, vector<1x128xf32>
    tpu.vector_store %arg4[%c0_12, %c0_13], %30 {strides = array<i32>} : memref<1x128xf32, #tpu.memory_space<vmem>>, vector<1x128xf32>,
    %32 = arith.extui %14 : vector<16x128xi1> to vector<16x128xi32>
    %cst_14 = arith.constant dense<0> : vector<16xi32>
    %33 = vector.multi_reduction <add>, %32, %cst_14 [1] : vector<16x128xi32> to vector<16xi32>
    %34 = vector.shape_cast %33 : vector<16xi32> to vector<16x1xi32>
    %c0_i32 = arith.constant 0 : i32
    %35 = arith.cmpi eq, %arg0, %c0_i32 : i32
    %36 = arith.extui %35 : i1 to i32
    %c0_i32_15 = arith.constant 0 : i32
    %37 = arith.cmpi ne, %36, %c0_i32_15 : i32
    scf.if %37 {
      %c0_i32_20 = arith.constant 0 : i32
      %41 = vector.broadcast %c0_i32_20 : i32 to vector<16x1xi32>
      %c0_21 = arith.constant 0 : index
      %c0_22 = arith.constant 0 : index
      %42 = vector.load %arg5[%c0_21, %c0_22] : memref<16x1xi32, #tpu.memory_space<vmem>>, vector<16x1xi32>
      tpu.vector_store %arg5[%c0_21, %c0_22], %41 {strides = array<i32>} : memref<16x1xi32, #tpu.memory_space<vmem>>, vector<16x1xi32>,
    } else {
    }
    %c0_16 = arith.constant 0 : index
    %c0_17 = arith.constant 0 : index
    %38 = vector.load %arg5[%c0_16, %c0_17] : memref<16x1xi32, #tpu.memory_space<vmem>>, vector<16x1xi32>
    %39 = arith.addi %38, %34 : vector<16x1xi32>
    %c0_18 = arith.constant 0 : index
    %c0_19 = arith.constant 0 : index
    %40 = vector.load %arg5[%c0_18, %c0_19] : memref<16x1xi32, #tpu.memory_space<vmem>>, vector<16x1xi32>
    tpu.vector_store %arg5[%c0_18, %c0_19], %39 {strides = array<i32>} : memref<16x1xi32, #tpu.memory_space<vmem>>, vector<16x1xi32>,
    return
  }
  func.func @transform_0(%arg0: i32) -> (i32, i32) {
    %c0_i32 = arith.constant 0 : i32
    %c0_i32_0 = arith.constant 0 : i32
    %c0_i32_1 = arith.constant 0 : i32
    return %c0_i32, %c0_i32_0 : i32, i32
  }
  func.func @transform_1(%arg0: i32) -> (i32, i32) {
    %c0_i32 = arith.constant 0 : i32
    %c0_i32_0 = arith.constant 0 : i32
    return %c0_i32, %arg0 : i32, i32
  }
  func.func @transform_2(%arg0: i32) -> (i32, i32) {
    %c0_i32 = arith.constant 0 : i32
    %c0_i32_0 = arith.constant 0 : i32
    return %c0_i32, %arg0 : i32, i32
  }
  func.func @transform_3(%arg0: i32) -> (i32, i32) {
    %c0_i32 = arith.constant 0 : i32
    %c0_i32_0 = arith.constant 0 : i32
    return %c0_i32, %arg0 : i32, i32
  }
  func.func @transform_4(%arg0: i32) -> (i32, i32) {
    %c0_i32 = arith.constant 0 : i32
    %c0_i32_0 = arith.constant 0 : i32
    %c0_i32_1 = arith.constant 0 : i32
    return %c0_i32, %c0_i32_0 : i32, i32
  }
}

</mosaic_0001>

<llo_original>
// kernel: tpu_custom_call.1
$region0: #{tpu_custom_call.1}
  #allocation0 [shape = 'u32[]', space=smem, size = 0x4, offset = 0x4, fixed_abs, tag = 'smem constant byte address 0x4 - core index']
  #allocation1 [shape = 'u32[144,128]{1,0:T(1,128)}', space=vmem, size = 0x12000, scoped, tag = 'internal scratch']
  %s0 = inlined_call_operand.vmem [shape: f32[16,1], index: 0, kind: input, shape index: {}]
  %s1 = inlined_call_operand.vmem [shape: s32[1,128], index: 1, kind: input, shape index: {}]
  %s2 = inlined_call_operand.vmem [shape: s32[1,128], index: 2, kind: input, shape index: {}]
  %s3 = inlined_call_operand.hbm [shape: f32[1,128], index: 3, kind: output, shape index: {0}]
  %s4 = inlined_call_operand.vmem [shape: s32[16,1], index: 4, kind: output, shape index: {1}]
  %5 = xla_tuple %s3, %s4
  %s6 = sld [smem:[#allocation0]]
  $region34: #{tpu_custom_call.1} parent=0
    _
  %s8 = ssub.s32 1, %s6
  %s9 = scalar_select 0, %s8, %s6
  $region1: #{tpu_custom_call.1} parent=0
    #allocation2 [shape = 'u8[512]{0}', space=vmem, size = 0x400, scoped, tag = 'output window, operand 0, single buffered']
    #allocation3 [shape = 's32[1]{0}', space=sflag, size = 0x4, scoped, tag = 'scoped memory for tpu_custom_call.1']
    %10 = vsyncpa [#allocation3], 0
    // Predicated region
    $region2: #{tpu_custom_call.1} parent=1 // pred_check
      _
    $region3: #{tpu_custom_call.1} parent=1 // pred_check_branch
      %12 = sbr.rel (0) target = $region5
    $region4: #{tpu_custom_call.1} parent=1 // pred_region
      _
    $region5: #{tpu_custom_call.1} parent=1 // pred_fallthru
      _
    // Predicated region
    $region6: #{tpu_custom_call.1} parent=1 // pred_check
      _
    $region7: #{tpu_custom_call.1} parent=1 // pred_check_branch
      %14 = sbr.rel (0) target = $region9
    $region8: #{tpu_custom_call.1} parent=1 // pred_region
      _
    $region9: #{tpu_custom_call.1} parent=1 // pred_fallthru
      _
    // Predicated region
    $region10: #{tpu_custom_call.1} parent=1 // pred_check
      _
    $region11: #{tpu_custom_call.1} parent=1 // pred_check_branch
      %16 = sbr.rel (0) target = $region13
    $region12: #{tpu_custom_call.1} parent=1 // pred_region
      _
    $region13: #{tpu_custom_call.1} parent=1 // pred_fallthru
      _
    %v17 = vld [vmem:[%s0] sm:$0xff]
    %v18 = vld [vmem:[%s0 + $0x8] sm:$0xff]
    %v19 = vsub.f32 0.0, %v17
    %v20 = vsub.f32 0.0, %v18
    %v21 = vmul.f32 %v19, 1.442695
    %v22 = vpow.pop %v21
    %v23 = vmul.f32 %v20, 1.442695
    %v24 = vpow.pop %v23
    %v25 = vadd.f32 %v22, 1.0
    %v26 = vadd.f32 %v24, 1.0
    %v27 = vrcp.pop %v25
    %v28 = vmul.f32 1.0, %v27
    %v29 = vrcp.pop %v26
    %v30 = vmul.f32 1.0, %v29
    %v31 = vlaneseq
    %v32 = vshrl.u32 %v31, 7
    %v33 = vadd.s32 %v32, 8
    %v34 = vld [vmem:[%s1] sm:$0x1]
    %v35 = vlaneseq
    %v36 = vshrl.u32 %v35, 7
    %v37 = vsub.s32 0, %v36
    %v38 = vrot.slane %v34, %v37
    %vm39 = vcmp.eq.s32.totalorder %v32, %v38
    %vm40 = vcmp.eq.s32.totalorder %v33, %v38
    %v41 = vld [vmem:[%s2] sm:$0x1]
    %v42 = vlaneseq
    %v43 = vshrl.u32 %v42, 7
    %v44 = vsub.s32 0, %v43
    %v45 = vrot.slane %v41, %v44
    %vm46 = vcmp.eq.s32.totalorder %v32, %v45
    %vm47 = vcmp.eq.s32.totalorder %v33, %v45
    %49 = vset.pattern.permute.xlu0 0
    %50 = vperm.xlu0 %49, %v28
    %v51 = vpop.permute.xlu0 %50
    %54 = vset.pattern.permute.xlu0 0
    %55 = vperm.xlu0 %54, %v30
    %v56 = vpop.permute.xlu0 %55
    %v58 = vsel %vm39, %v51, 0.0
    %v59 = vsel %vm40, %v56, 0.0
    %v60 = vadd.f32 %v58, %v59
    %v61 = vrot.slane %v60, 4
    %v62 = vadd.f32 %v60, %v61
    %v63 = vrot.slane %v62, 2
    %v64 = vadd.f32 %v62, %v63
    %v65 = vrot.slane %v64, 1
    %v66 = vadd.f32 %v64, %v65
    %v67 = vsel %vm46, %v51, 0.0
    %v68 = vsel %vm47, %v56, 0.0
    %v69 = vadd.f32 %v67, %v68
    %v70 = vrot.slane %v69, 4
    %v71 = vadd.f32 %v69, %v70
    %v72 = vrot.slane %v71, 2
    %v73 = vadd.f32 %v71, %v72
    %v74 = vrot.slane %v73, 1
    %v75 = vadd.f32 %v73, %v74
    %v76 = vsub.f32 %v66, %v75
    %v77 = vand.u32 2147483647, %v76
    %v78 = vsub.f32 1.0, %v77
    %79 = vst [vmem:[#allocation2] sm:$0x1] %v78
    %v80 = vsel %vm46, 1, 0
    %v81 = vsel %vm47, 1, 0
    %v82 = vand.u32 %v80, 65535
    %v83 = vshrl.u32 %v80, 16
    %v84 = vcvt.s32.f32 %v82
    %v85 = vcvt.s32.f32 %v83
    %86 = vadd.xlane.f32.xlu0 %v84
    %v87 = vpop.xlane.xlu0 %86
    %88 = vadd.xlane.f32.xlu0 %v85
    %v89 = vpop.xlane.xlu0 %88
    %v90 = vcvt.f32.s32 %v87
    %v91 = vcvt.f32.s32 %v89
    %v92 = vshll.u32 %v91, 16
    %v93 = vadd.s32 %v92, %v90
    %v94 = vand.u32 %v81, 65535
    %v95 = vshrl.u32 %v81, 16
    %v96 = vcvt.s32.f32 %v94
    %v97 = vcvt.s32.f32 %v95
    %98 = vadd.xlane.f32.xlu0 %v96
    %v99 = vpop.xlane.xlu0 %98
    %100 = vadd.xlane.f32.xlu0 %v97
    %v101 = vpop.xlane.xlu0 %100
    %v102 = vcvt.f32.s32 %v99
    %v103 = vcvt.f32.s32 %v101
    %v104 = vshll.u32 %v103, 16
    %v105 = vadd.s32 %v104, %v102
    %p106 = scmp.eq.s32.totalorder 0, 0
    // Predicated region
    $region14: #{tpu_custom_call.1} parent=1 // pred_check
      %p107 = pneg %p106
    $region15: #{tpu_custom_call.1} parent=1 // pred_check_branch
      %109 = sbr.rel (%p107) target = $region17
    $region16: #{tpu_custom_call.1} parent=1 // pred_region
      %vm110 = vcmask 7168
      %111 = vst.msk [vmem:[%s4] sm:$0xff] %vm110, 0
      %112 = vst.msk [vmem:[%s4 + $0x8] sm:$0xff] %vm110, 0
    $region17: #{tpu_custom_call.1} parent=1 // pred_fallthru
      _
    %v113 = vld [vmem:[%s4] sm:$0xff]
    %v114 = vld [vmem:[%s4 + $0x8] sm:$0xff]
    %v115 = vadd.s32 %v113, %v93
    %v116 = vadd.s32 %v114, %v105
    %vm117 = vcmask 7168
    %118 = vst.msk [vmem:[%s4] sm:$0xff] %vm117, %v115
    %119 = vst.msk [vmem:[%s4 + $0x8] sm:$0xff] %vm117, %v116
    // Predicated region
    $region18: #{tpu_custom_call.1} parent=1 // pred_check
      _
    $region19: #{tpu_custom_call.1} parent=1 // pred_check_branch
      %121 = sbr.rel (0) target = $region21
    $region20: #{tpu_custom_call.1} parent=1 // pred_region
      %s123 = ssub.s32 16, 16
      %124 = vsyncadd [#allocation3], %s123
      %s126 = sshll.u32 [#allocation2], 4
      %s127 = int_to_ptr.vmem [resolvable:$true] %s126
      %129 = dma.vmem_to_hbm [thread:$0]  %s127, 16, %s3, [#allocation3]
    $region21: #{tpu_custom_call.1} parent=1 // pred_fallthru
      _
    // Predicated region
    $region22: #{tpu_custom_call.1} parent=1 // pred_check
      _
    $region23: #{tpu_custom_call.1} parent=1 // pred_check_branch
      %131 = sbr.rel (0) target = $region25
    $region24: #{tpu_custom_call.1} parent=1 // pred_region
      _
    $region25: #{tpu_custom_call.1} parent=1 // pred_fallthru
      _
    // Predicated region
    $region26: #{tpu_custom_call.1} parent=1 // pred_check
      _
    $region27: #{tpu_custom_call.1} parent=1 // pred_check_branch
      %133 = sbr.rel (0) target = $region29
    $region28: #{tpu_custom_call.1} parent=1 // pred_region
      %134 = dma.done [#allocation3], 16
    $region29: #{tpu_custom_call.1} parent=1 // pred_fallthru
      _
    // Predicated region
    $region30: #{tpu_custom_call.1} parent=1 // pred_check
      _
    $region31: #{tpu_custom_call.1} parent=1 // pred_check_branch
      %136 = sbr.rel (0) target = $region33
    $region32: #{tpu_custom_call.1} parent=1 // pred_region
      _
    $region33: #{tpu_custom_call.1} parent=1 // pred_fallthru
      _
    %137 = vsyncpa [#allocation3], 1

</llo_original>
